<compile_context>
chip_gen: v5e
topology: v5e:2x2
jax: 0.10.0
libtpu: 0.0.40
codegen_flags: <defaults>
</compile_context>

<pallas_src>
import jax
import jax.numpy as jnp
from jax.experimental import pallas as pl
from jax.experimental.pallas import tpu as pltpu


# ----------------------------------------------------------------------------
# Pallas kernel: complex channel contraction for one (Co-tile, M-tile) block.
#   out[b, o, m] = sum_i x[b, i, m] * w[i, o, m]   (complex, f32 accumulation)
# Block shapes:  x*: (B, Ci, TM)   w*: (Ci, TCO, TM)   o*: (B, TCO, TM)
# ----------------------------------------------------------------------------
def _spectral_mul_kernel(xr_ref, xi_ref, wr_ref, wi_ref, or_ref, oi_ref):
    B, Ci, TM = xr_ref.shape
    TCO = wr_ref.shape[1]

    acc_r = jnp.zeros((B, TCO, TM), jnp.float32)
    acc_i = jnp.zeros((B, TCO, TM), jnp.float32)

    # Explicit accumulation over input channels: only the (B, TCO, TM)
    # accumulators stay live.  Ci is a static Python int, so the loop unrolls
    # with free static slices; weight rows are streamed per-i from the
    # already-resident VMEM block (no full weight slab in vregs).
    for i in range(Ci):
        xr_i = xr_ref[:, i, :].astype(jnp.float32)[:, None, :]   # (B, 1, TM)
        xi_i = xi_ref[:, i, :].astype(jnp.float32)[:, None, :]
        wr_i = wr_ref[i].astype(jnp.float32)[None]                # (1, TCO, TM)
        wi_i = wi_ref[i].astype(jnp.float32)[None]
        # classic 4-mult / 4-add complex MAC (VPU has no f32 FMA; Karatsuba
        # saves nothing in the binding VALU slot and costs vreg pressure)
        acc_r = acc_r + (xr_i * wr_i - xi_i * wi_i)
        acc_i = acc_i + (xr_i * wi_i + xi_i * wr_i)

    or_ref[...] = acc_r
    oi_ref[...] = acc_i


# ----------------------------------------------------------------------------
# Tiling / VMEM planning
# ----------------------------------------------------------------------------
def _vmem_budget_bytes():
    """Generation-aware VMEM budget (<=32 MiB on 64 MiB v7x, 48 MiB on 128 MiB parts)."""
    try:
        cap = int(pltpu.get_tpu_info().vmem_capacity_bytes)
    except Exception:  # pragma: no cover - conservative fallback
        cap = 64 << 20
    return min(cap // 2, 48 << 20)


def _pick_tiles(mpad, B, Ci, Co, in_itemsize, vmem_budget):
    """Pick (lane tile tm, Co tile tco).

    Constraints:
      * tm divides mpad and is a multiple of 128 (lane-dense, unmasked stores);
        tm == mpad is allowed.
      * tco divides Co and is either Co itself or a multiple of 8 (sublane rule).
      * f32 re+im accumulators (2*B*tco*tm*4 bytes) fit in <=32 vregs (128 KiB).
      * double-buffered streamed blocks fit the VMEM budget.
    """
    VREG_ACC_BUDGET = 128 * 1024
    tm_cands = sorted({mpad // n for n in range(1, mpad // 128 + 1)
                       if mpad % n == 0 and (mpad // n) % 128 == 0}, reverse=True)
    co_cands = sorted({d for d in range(1, Co + 1)
                       if Co % d == 0 and (d == Co or d % 8 == 0)}, reverse=True)
    for tm in tm_cands:
        for tco in co_cands:
            acc_bytes = 2 * B * tco * tm * 4
            if acc_bytes > VREG_ACC_BUDGET:
                continue
            stream = tm * (2 * B * Ci * in_itemsize
                           + 2 * Ci * tco * in_itemsize
                           + 2 * B * tco * 4)
            if 2 * stream + acc_bytes + (2 << 20) > vmem_budget:
                continue
            return tm, tco
    # TODO(synk): tile the batch dimension too for very large B.
    return 128, co_cands[-1]


# ----------------------------------------------------------------------------
# pallas_call wrapper
#   xr/xi: (B, Ci, Mpad)   wr/wi: (Ci, Co, Mpad)  ->  (B, Co, Mpad) f32 x2
# ----------------------------------------------------------------------------
def _spectral_mul(xr, xi, wr, wi, tm, tco, vmem_limit):
    B, Ci, Mpad = xr.shape
    Co = wr.shape[1]
    n_m = Mpad // tm
    n_co = Co // tco

    x_spec = pl.BlockSpec((B, Ci, tm), lambda co, m: (0, 0, m))
    w_spec = pl.BlockSpec((Ci, tco, tm), lambda co, m: (0, co, m))
    o_spec = pl.BlockSpec((B, tco, tm), lambda co, m: (0, co, m))

    return pl.pallas_call(
        _spectral_mul_kernel,
        out_shape=(jax.ShapeDtypeStruct((B, Co, Mpad), jnp.float32),
                   jax.ShapeDtypeStruct((B, Co, Mpad), jnp.float32)),
        grid_spec=pltpu.PrefetchScalarGridSpec(
            num_scalar_prefetch=0,
            grid=(n_co, n_m),
            in_specs=[x_spec, x_spec, w_spec, w_spec],
            out_specs=[o_spec, o_spec],
        ),
        compiler_params=pltpu.CompilerParams(
            dimension_semantics=("parallel", "parallel"),
            vmem_limit_bytes=int(vmem_limit),
        ),
    )(xr, xi, wr, wi)


# ----------------------------------------------------------------------------
# SpectralConv3d forward
# ----------------------------------------------------------------------------
class SpectralConv3d:
    def __init__(self, in_channels, out_channels, modes1, modes2, modes3, key,
                 compute_dtype=jnp.bfloat16):
        self.in_channels = in_channels
        self.out_channels = out_channels
        self.modes1, self.modes2, self.modes3 = modes1, modes2, modes3
        self.compute_dtype = compute_dtype

        scale = 1.0 / (in_channels * out_channels)
        wshape = (in_channels, out_channels, modes1, modes2, modes3, 2)
        ks = jax.random.split(key, 4)
        # deterministic init: scale * U(0,1), matching reset_parameters()
        self.weights = [scale * jax.random.uniform(k, wshape, dtype=jnp.float32)
                        for k in ks]

        # --- pre-layout weights ONCE: fold 4 corners onto the lane axis,
        #     pad to a multiple of 128, cast to the streaming dtype.
        M = modes1 * modes2 * modes3
        self._m = M
        mfold = 4 * M
        self._mpad = ((mfold + 127) // 128) * 128
        wcat = jnp.concatenate(
            [w.reshape(in_channels, out_channels, M, 2) for w in self.weights],
            axis=2)                                            # (Ci, Co, 4M, 2)
        wr, wi = wcat[..., 0], wcat[..., 1]
        pad = self._mpad - mfold
        if pad:
            wr = jnp.pad(wr, ((0, 0), (0, 0), (0, pad)))
            wi = jnp.pad(wi, ((0, 0), (0, 0), (0, pad)))
        self._wr = wr.astype(compute_dtype)
        self._wi = wi.astype(compute_dtype)

    def _plan(self, B):
        budget = _vmem_budget_bytes()
        itemsize = jnp.dtype(self.compute_dtype).itemsize
        tm, tco = _pick_tiles(self._mpad, B, self.in_channels, self.out_channels,
                              itemsize, budget)
        stream = tm * (2 * B * self.in_channels * itemsize
                       + 2 * self.in_channels * tco * itemsize
                       + 2 * B * tco * 4)
        vmem_limit = min(max(3 * stream + (4 << 20), 16 << 20), budget)
        return tm, tco, vmem_limit

    def __call__(self, x):
        B, Ci, D, H, W = x.shape
        Co = self.out_channels
        m1, m2, m3 = self.modes1, self.modes2, self.modes3
        M = self._m
        Wr = W // 2 + 1

        # rFFT (no Pallas equivalent — stays in plain JAX)
        x_ft = jnp.fft.rfftn(x, axes=(-3, -2, -1))         # (B, Ci, D, H, Wr) c64

        # four retained spectral corners, folded onto the lane axis -> (B,Ci,4M)
        xc = jnp.concatenate([
            x_ft[:, :, :m1, :m2, :m3].reshape(B, Ci, M),
            x_ft[:, :, -m1:, :m2, :m3].reshape(B, Ci, M),
            x_ft[:, :, :m1, -m2:, :m3].reshape(B, Ci, M),
            x_ft[:, :, -m1:, -m2:, :m3].reshape(B, Ci, M),
        ], axis=-1)
        xr = jnp.real(xc).astype(self.compute_dtype)
        xi = jnp.imag(xc).astype(self.compute_dtype)
        pad = self._mpad - 4 * M
        if pad:
            xr = jnp.pad(xr, ((0, 0), (0, 0), (0, pad)))
            xi = jnp.pad(xi, ((0, 0), (0, 0), (0, pad)))

        # --- Pallas hot path: complex channel contraction per (Co, M) tile ---
        tm, tco, vmem_limit = self._plan(B)
        out_r, out_i = _spectral_mul(xr, xi, self._wr, self._wi, tm, tco, vmem_limit)

        # slice off lane padding BEFORE reshaping back to per-corner modes
        out_c = jax.lax.complex(out_r[..., :4 * M], out_i[..., :4 * M])
        out_c = out_c.reshape(B, Co, 4, m1, m2, m3).astype(jnp.complex64)

        # scatter corners back into the (zero) spectral output
        out_ft = jnp.zeros((B, Co, D, H, Wr), dtype=jnp.complex64)
        out_ft = out_ft.at[:, :, :m1, :m2, :m3].set(out_c[:, :, 0])
        out_ft = out_ft.at[:, :, -m1:, :m2, :m3].set(out_c[:, :, 1])
        out_ft = out_ft.at[:, :, :m1, -m2:, :m3].set(out_c[:, :, 2])
        out_ft = out_ft.at[:, :, -m1:, -m2:, :m3].set(out_c[:, :, 3])

        # inverse rFFT back to physical space (no Pallas equivalent)
        return jnp.fft.irfftn(out_ft, s=(D, H, W), axes=(-3, -2, -1))

    # pure-JAX reference of the whole forward (for correctness check)
    def reference(self, x):
        B, Ci, D, H, W = x.shape
        Co = self.out_channels
        m1, m2, m3 = self.modes1, self.modes2, self.modes3
        Wr = W // 2 + 1
        x_ft = jnp.fft.rfftn(x, axes=(-3, -2, -1))
        cw = [w[..., 0] + 1j * w[..., 1] for w in self.weights]
        out_ft = jnp.zeros((B, Co, D, H, Wr), dtype=jnp.complex64)
        e = lambda a, w: jnp.einsum('bixyz,ioxyz->boxyz', a, w)
        out_ft = out_ft.at[:, :, :m1, :m2, :m3].set(e(x_ft[:, :, :m1, :m2, :m3], cw[0]))
        out_ft = out_ft.at[:, :, -m1:, :m2, :m3].set(e(x_ft[:, :, -m1:, :m2, :m3], cw[1]))
        out_ft = out_ft.at[:, :, :m1, -m2:, :m3].set(e(x_ft[:, :, :m1, -m2:, :m3], cw[2]))
        out_ft = out_ft.at[:, :, -m1:, -m2:, :m3].set(e(x_ft[:, :, -m1:, -m2:, :m3], cw[3]))
        return jnp.fft.irfftn(out_ft, s=(D, H, W), axes=(-3, -2, -1))


if __name__ == "__main__":
    key = jax.random.PRNGKey(0)
    kx, kw = jax.random.split(key)

    # small shapes consistent with the module
    B, Cin, Cout = 2, 8, 8
    D = H = W = 16
    modes = 4  # <= W//2 + 1 = 9

    x = jax.random.normal(kx, (B, Cin, D, H, W), dtype=jnp.float32)

    # f32-streaming variant: tight check against the pure-JAX reference
    layer_f32 = SpectralConv3d(Cin, Cout, modes, modes, modes, kw,
                               compute_dtype=jnp.float32)
    y_ref = jax.block_until_ready(layer_f32.reference(x))
    y_f32 = jax.block_until_ready(layer_f32(x))
    assert y_f32.shape == (B, Cout, D, H, W)
    assert jnp.allclose(y_f32, y_ref, atol=1e-4, rtol=1e-4)

    # bf16-streaming variant (default, halves HBM traffic): looser check
    layer_bf16 = SpectralConv3d(Cin, Cout, modes, modes, modes, kw,
                                compute_dtype=jnp.bfloat16)
    y_bf16 = jax.block_until_ready(layer_bf16(x))
    assert y_bf16.shape == (B, Cout, D, H, W)
    rel_err = float(jnp.max(jnp.abs(y_bf16 - y_ref)) / jnp.max(jnp.abs(y_ref)))
    assert rel_err < 5e-2, f"bf16 relative error too large: {rel_err}"

    print("KERNEL_OK")
</pallas_src>

<mosaic_0001>
module attributes {stable_mosaic.version = 11 : i64} {
  func.func @_spectral_mul_kernel(%arg0: i32, %arg1: i32, %arg2: memref<2x8x256xf32, #tpu.memory_space<vmem>>, %arg3: memref<2x8x256xf32, #tpu.memory_space<vmem>>, %arg4: memref<8x8x256xf32, #tpu.memory_space<vmem>>, %arg5: memref<8x8x256xf32, #tpu.memory_space<vmem>>, %arg6: memref<2x8x256xf32, #tpu.memory_space<vmem>>, %arg7: memref<2x8x256xf32, #tpu.memory_space<vmem>>) attributes {dimension_semantics = [#tpu.dimension_semantics<parallel>, #tpu.dimension_semantics<parallel>], iteration_bounds = array<i64: 1, 1>, scalar_prefetch = 0 : i64, scratch_operands = 0 : i64, tpu.core_type = #tpu.core_type<tc>, window_params = [{transform_indices = @transform_0, window_bounds = array<i64: 2, 8, 256>}, {transform_indices = @transform_1, window_bounds = array<i64: 2, 8, 256>}, {transform_indices = @transform_2, window_bounds = array<i64: 8, 8, 256>}, {transform_indices = @transform_3, window_bounds = array<i64: 8, 8, 256>}, {transform_indices = @transform_4, window_bounds = array<i64: 2, 8, 256>}, {transform_indices = @transform_5, window_bounds = array<i64: 2, 8, 256>}]} {
    %cst = arith.constant 0.000000e+00 : f32
    %0 = vector.broadcast %cst : f32 to vector<2x8x256xf32>
    %cst_0 = arith.constant 0.000000e+00 : f32
    %1 = vector.broadcast %cst_0 : f32 to vector<2x8x256xf32>
    %c0 = arith.constant 0 : index
    %c0_1 = arith.constant 0 : index
    %c0_2 = arith.constant 0 : index
    %2 = vector.load %arg2[%c0, %c0_1, %c0_2] : memref<2x8x256xf32, #tpu.memory_space<vmem>>, vector<2x1x256xf32>
    %3 = vector.shape_cast %2 : vector<2x1x256xf32> to vector<2x256xf32>
    %4 = vector.shape_cast %3 : vector<2x256xf32> to vector<2x1x256xf32>
    %c0_3 = arith.constant 0 : index
    %c0_4 = arith.constant 0 : index
    %c0_5 = arith.constant 0 : index
    %5 = vector.load %arg3[%c0_3, %c0_4, %c0_5] : memref<2x8x256xf32, #tpu.memory_space<vmem>>, vector<2x1x256xf32>
    %6 = vector.shape_cast %5 : vector<2x1x256xf32> to vector<2x256xf32>
    %7 = vector.shape_cast %6 : vector<2x256xf32> to vector<2x1x256xf32>
    %c0_6 = arith.constant 0 : index
    %c0_7 = arith.constant 0 : index
    %c0_8 = arith.constant 0 : index
    %8 = vector.load %arg4[%c0_6, %c0_7, %c0_8] : memref<8x8x256xf32, #tpu.memory_space<vmem>>, vector<1x8x256xf32>
    %9 = vector.shape_cast %8 : vector<1x8x256xf32> to vector<8x256xf32>
    %10 = vector.shape_cast %9 : vector<8x256xf32> to vector<1x8x256xf32>
    %c0_9 = arith.constant 0 : index
    %c0_10 = arith.constant 0 : index
    %c0_11 = arith.constant 0 : index
    %11 = vector.load %arg5[%c0_9, %c0_10, %c0_11] : memref<8x8x256xf32, #tpu.memory_space<vmem>>, vector<1x8x256xf32>
    %12 = vector.shape_cast %11 : vector<1x8x256xf32> to vector<8x256xf32>
    %13 = vector.shape_cast %12 : vector<8x256xf32> to vector<1x8x256xf32>
    %14 = vector.broadcast %4 : vector<2x1x256xf32> to vector<2x8x256xf32>
    %15 = vector.broadcast %10 : vector<1x8x256xf32> to vector<2x8x256xf32>
    %16 = arith.mulf %14, %15 : vector<2x8x256xf32>
    %17 = vector.broadcast %7 : vector<2x1x256xf32> to vector<2x8x256xf32>
    %18 = vector.broadcast %13 : vector<1x8x256xf32> to vector<2x8x256xf32>
    %19 = arith.mulf %17, %18 : vector<2x8x256xf32>
    %20 = arith.subf %16, %19 : vector<2x8x256xf32>
    %21 = arith.addf %0, %20 : vector<2x8x256xf32>
    %22 = vector.broadcast %4 : vector<2x1x256xf32> to vector<2x8x256xf32>
    %23 = vector.broadcast %13 : vector<1x8x256xf32> to vector<2x8x256xf32>
    %24 = arith.mulf %22, %23 : vector<2x8x256xf32>
    %25 = vector.broadcast %7 : vector<2x1x256xf32> to vector<2x8x256xf32>
    %26 = vector.broadcast %10 : vector<1x8x256xf32> to vector<2x8x256xf32>
    %27 = arith.mulf %25, %26 : vector<2x8x256xf32>
    %28 = arith.addf %24, %27 : vector<2x8x256xf32>
    %29 = arith.addf %1, %28 : vector<2x8x256xf32>
    %c0_12 = arith.constant 0 : index
    %c1 = arith.constant 1 : index
    %c0_13 = arith.constant 0 : index
    %30 = vector.load %arg2[%c0_12, %c1, %c0_13] : memref<2x8x256xf32, #tpu.memory_space<vmem>>, vector<2x1x256xf32>
    %31 = vector.shape_cast %30 : vector<2x1x256xf32> to vector<2x256xf32>
    %32 = vector.shape_cast %31 : vector<2x256xf32> to vector<2x1x256xf32>
    %c0_14 = arith.constant 0 : index
    %c1_15 = arith.constant 1 : index
    %c0_16 = arith.constant 0 : index
    %33 = vector.load %arg3[%c0_14, %c1_15, %c0_16] : memref<2x8x256xf32, #tpu.memory_space<vmem>>, vector<2x1x256xf32>
    %34 = vector.shape_cast %33 : vector<2x1x256xf32> to vector<2x256xf32>
    %35 = vector.shape_cast %34 : vector<2x256xf32> to vector<2x1x256xf32>
    %c1_17 = arith.constant 1 : index
    %c0_18 = arith.constant 0 : index
    %c0_19 = arith.constant 0 : index
    %36 = vector.load %arg4[%c1_17, %c0_18, %c0_19] : memref<8x8x256xf32, #tpu.memory_space<vmem>>, vector<1x8x256xf32>
    %37 = vector.shape_cast %36 : vector<1x8x256xf32> to vector<8x256xf32>
    %38 = vector.shape_cast %37 : vector<8x256xf32> to vector<1x8x256xf32>
    %c1_20 = arith.constant 1 : index
    %c0_21 = arith.constant 0 : index
    %c0_22 = arith.constant 0 : index
    %39 = vector.load %arg5[%c1_20, %c0_21, %c0_22] : memref<8x8x256xf32, #tpu.memory_space<vmem>>, vector<1x8x256xf32>
    %40 = vector.shape_cast %39 : vector<1x8x256xf32> to vector<8x256xf32>
    %41 = vector.shape_cast %40 : vector<8x256xf32> to vector<1x8x256xf32>
    %42 = vector.broadcast %32 : vector<2x1x256xf32> to vector<2x8x256xf32>
    %43 = vector.broadcast %38 : vector<1x8x256xf32> to vector<2x8x256xf32>
    %44 = arith.mulf %42, %43 : vector<2x8x256xf32>
    %45 = vector.broadcast %35 : vector<2x1x256xf32> to vector<2x8x256xf32>
    %46 = vector.broadcast %41 : vector<1x8x256xf32> to vector<2x8x256xf32>
    %47 = arith.mulf %45, %46 : vector<2x8x256xf32>
    %48 = arith.subf %44, %47 : vector<2x8x256xf32>
    %49 = arith.addf %21, %48 : vector<2x8x256xf32>
    %50 = vector.broadcast %32 : vector<2x1x256xf32> to vector<2x8x256xf32>
    %51 = vector.broadcast %41 : vector<1x8x256xf32> to vector<2x8x256xf32>
    %52 = arith.mulf %50, %51 : vector<2x8x256xf32>
    %53 = vector.broadcast %35 : vector<2x1x256xf32> to vector<2x8x256xf32>
    %54 = vector.broadcast %38 : vector<1x8x256xf32> to vector<2x8x256xf32>
    %55 = arith.mulf %53, %54 : vector<2x8x256xf32>
    %56 = arith.addf %52, %55 : vector<2x8x256xf32>
    %57 = arith.addf %29, %56 : vector<2x8x256xf32>
    %c0_23 = arith.constant 0 : index
    %c2 = arith.constant 2 : index
    %c0_24 = arith.constant 0 : index
    %58 = vector.load %arg2[%c0_23, %c2, %c0_24] : memref<2x8x256xf32, #tpu.memory_space<vmem>>, vector<2x1x256xf32>
    %59 = vector.shape_cast %58 : vector<2x1x256xf32> to vector<2x256xf32>
    %60 = vector.shape_cast %59 : vector<2x256xf32> to vector<2x1x256xf32>
    %c0_25 = arith.constant 0 : index
    %c2_26 = arith.constant 2 : index
    %c0_27 = arith.constant 0 : index
    %61 = vector.load %arg3[%c0_25, %c2_26, %c0_27] : memref<2x8x256xf32, #tpu.memory_space<vmem>>, vector<2x1x256xf32>
    %62 = vector.shape_cast %61 : vector<2x1x256xf32> to vector<2x256xf32>
    %63 = vector.shape_cast %62 : vector<2x256xf32> to vector<2x1x256xf32>
    %c2_28 = arith.constant 2 : index
    %c0_29 = arith.constant 0 : index
    %c0_30 = arith.constant 0 : index
    %64 = vector.load %arg4[%c2_28, %c0_29, %c0_30] : memref<8x8x256xf32, #tpu.memory_space<vmem>>, vector<1x8x256xf32>
    %65 = vector.shape_cast %64 : vector<1x8x256xf32> to vector<8x256xf32>
    %66 = vector.shape_cast %65 : vector<8x256xf32> to vector<1x8x256xf32>
    %c2_31 = arith.constant 2 : index
    %c0_32 = arith.constant 0 : index
    %c0_33 = arith.constant 0 : index
    %67 = vector.load %arg5[%c2_31, %c0_32, %c0_33] : memref<8x8x256xf32, #tpu.memory_space<vmem>>, vector<1x8x256xf32>
    %68 = vector.shape_cast %67 : vector<1x8x256xf32> to vector<8x256xf32>
    %69 = vector.shape_cast %68 : vector<8x256xf32> to vector<1x8x256xf32>
    %70 = vector.broadcast %60 : vector<2x1x256xf32> to vector<2x8x256xf32>
    %71 = vector.broadcast %66 : vector<1x8x256xf32> to vector<2x8x256xf32>
    %72 = arith.mulf %70, %71 : vector<2x8x256xf32>
    %73 = vector.broadcast %63 : vector<2x1x256xf32> to vector<2x8x256xf32>
    %74 = vector.broadcast %69 : vector<1x8x256xf32> to vector<2x8x256xf32>
    %75 = arith.mulf %73, %74 : vector<2x8x256xf32>
    %76 = arith.subf %72, %75 : vector<2x8x256xf32>
    %77 = arith.addf %49, %76 : vector<2x8x256xf32>
    %78 = vector.broadcast %60 : vector<2x1x256xf32> to vector<2x8x256xf32>
    %79 = vector.broadcast %69 : vector<1x8x256xf32> to vector<2x8x256xf32>
    %80 = arith.mulf %78, %79 : vector<2x8x256xf32>
    %81 = vector.broadcast %63 : vector<2x1x256xf32> to vector<2x8x256xf32>
    %82 = vector.broadcast %66 : vector<1x8x256xf32> to vector<2x8x256xf32>
    %83 = arith.mulf %81, %82 : vector<2x8x256xf32>
    %84 = arith.addf %80, %83 : vector<2x8x256xf32>
    %85 = arith.addf %57, %84 : vector<2x8x256xf32>
    %c0_34 = arith.constant 0 : index
    %c3 = arith.constant 3 : index
    %c0_35 = arith.constant 0 : index
    %86 = vector.load %arg2[%c0_34, %c3, %c0_35] : memref<2x8x256xf32, #tpu.memory_space<vmem>>, vector<2x1x256xf32>
    %87 = vector.shape_cast %86 : vector<2x1x256xf32> to vector<2x256xf32>
    %88 = vector.shape_cast %87 : vector<2x256xf32> to vector<2x1x256xf32>
    %c0_36 = arith.constant 0 : index
    %c3_37 = arith.constant 3 : index
    %c0_38 = arith.constant 0 : index
    %89 = vector.load %arg3[%c0_36, %c3_37, %c0_38] : memref<2x8x256xf32, #tpu.memory_space<vmem>>, vector<2x1x256xf32>
    %90 = vector.shape_cast %89 : vector<2x1x256xf32> to vector<2x256xf32>
    %91 = vector.shape_cast %90 : vector<2x256xf32> to vector<2x1x256xf32>
    %c3_39 = arith.constant 3 : index
    %c0_40 = arith.constant 0 : index
    %c0_41 = arith.constant 0 : index
    %92 = vector.load %arg4[%c3_39, %c0_40, %c0_41] : memref<8x8x256xf32, #tpu.memory_space<vmem>>, vector<1x8x256xf32>
    %93 = vector.shape_cast %92 : vector<1x8x256xf32> to vector<8x256xf32>
    %94 = vector.shape_cast %93 : vector<8x256xf32> to vector<1x8x256xf32>
    %c3_42 = arith.constant 3 : index
    %c0_43 = arith.constant 0 : index
    %c0_44 = arith.constant 0 : index
    %95 = vector.load %arg5[%c3_42, %c0_43, %c0_44] : memref<8x8x256xf32, #tpu.memory_space<vmem>>, vector<1x8x256xf32>
    %96 = vector.shape_cast %95 : vector<1x8x256xf32> to vector<8x256xf32>
    %97 = vector.shape_cast %96 : vector<8x256xf32> to vector<1x8x256xf32>
    %98 = vector.broadcast %88 : vector<2x1x256xf32> to vector<2x8x256xf32>
    %99 = vector.broadcast %94 : vector<1x8x256xf32> to vector<2x8x256xf32>
    %100 = arith.mulf %98, %99 : vector<2x8x256xf32>
    %101 = vector.broadcast %91 : vector<2x1x256xf32> to vector<2x8x256xf32>
    %102 = vector.broadcast %97 : vector<1x8x256xf32> to vector<2x8x256xf32>
    %103 = arith.mulf %101, %102 : vector<2x8x256xf32>
    %104 = arith.subf %100, %103 : vector<2x8x256xf32>
    %105 = arith.addf %77, %104 : vector<2x8x256xf32>
    %106 = vector.broadcast %88 : vector<2x1x256xf32> to vector<2x8x256xf32>
    %107 = vector.broadcast %97 : vector<1x8x256xf32> to vector<2x8x256xf32>
    %108 = arith.mulf %106, %107 : vector<2x8x256xf32>
    %109 = vector.broadcast %91 : vector<2x1x256xf32> to vector<2x8x256xf32>
    %110 = vector.broadcast %94 : vector<1x8x256xf32> to vector<2x8x256xf32>
    %111 = arith.mulf %109, %110 : vector<2x8x256xf32>
    %112 = arith.addf %108, %111 : vector<2x8x256xf32>
    %113 = arith.addf %85, %112 : vector<2x8x256xf32>
    %c0_45 = arith.constant 0 : index
    %c4 = arith.constant 4 : index
    %c0_46 = arith.constant 0 : index
    %114 = vector.load %arg2[%c0_45, %c4, %c0_46] : memref<2x8x256xf32, #tpu.memory_space<vmem>>, vector<2x1x256xf32>
    %115 = vector.shape_cast %114 : vector<2x1x256xf32> to vector<2x256xf32>
    %116 = vector.shape_cast %115 : vector<2x256xf32> to vector<2x1x256xf32>
    %c0_47 = arith.constant 0 : index
    %c4_48 = arith.constant 4 : index
    %c0_49 = arith.constant 0 : index
    %117 = vector.load %arg3[%c0_47, %c4_48, %c0_49] : memref<2x8x256xf32, #tpu.memory_space<vmem>>, vector<2x1x256xf32>
    %118 = vector.shape_cast %117 : vector<2x1x256xf32> to vector<2x256xf32>
    %119 = vector.shape_cast %118 : vector<2x256xf32> to vector<2x1x256xf32>
    %c4_50 = arith.constant 4 : index
    %c0_51 = arith.constant 0 : index
    %c0_52 = arith.constant 0 : index
    %120 = vector.load %arg4[%c4_50, %c0_51, %c0_52] : memref<8x8x256xf32, #tpu.memory_space<vmem>>, vector<1x8x256xf32>
    %121 = vector.shape_cast %120 : vector<1x8x256xf32> to vector<8x256xf32>
    %122 = vector.shape_cast %121 : vector<8x256xf32> to vector<1x8x256xf32>
    %c4_53 = arith.constant 4 : index
    %c0_54 = arith.constant 0 : index
    %c0_55 = arith.constant 0 : index
    %123 = vector.load %arg5[%c4_53, %c0_54, %c0_55] : memref<8x8x256xf32, #tpu.memory_space<vmem>>, vector<1x8x256xf32>
    %124 = vector.shape_cast %123 : vector<1x8x256xf32> to vector<8x256xf32>
    %125 = vector.shape_cast %124 : vector<8x256xf32> to vector<1x8x256xf32>
    %126 = vector.broadcast %116 : vector<2x1x256xf32> to vector<2x8x256xf32>
    %127 = vector.broadcast %122 : vector<1x8x256xf32> to vector<2x8x256xf32>
    %128 = arith.mulf %126, %127 : vector<2x8x256xf32>
    %129 = vector.broadcast %119 : vector<2x1x256xf32> to vector<2x8x256xf32>
    %130 = vector.broadcast %125 : vector<1x8x256xf32> to vector<2x8x256xf32>
    %131 = arith.mulf %129, %130 : vector<2x8x256xf32>
    %132 = arith.subf %128, %131 : vector<2x8x256xf32>
    %133 = arith.addf %105, %132 : vector<2x8x256xf32>
    %134 = vector.broadcast %116 : vector<2x1x256xf32> to vector<2x8x256xf32>
    %135 = vector.broadcast %125 : vector<1x8x256xf32> to vector<2x8x256xf32>
    %136 = arith.mulf %134, %135 : vector<2x8x256xf32>
    %137 = vector.broadcast %119 : vector<2x1x256xf32> to vector<2x8x256xf32>
    %138 = vector.broadcast %122 : vector<1x8x256xf32> to vector<2x8x256xf32>
    %139 = arith.mulf %137, %138 : vector<2x8x256xf32>
    %140 = arith.addf %136, %139 : vector<2x8x256xf32>
    %141 = arith.addf %113, %140 : vector<2x8x256xf32>
    %c0_56 = arith.constant 0 : index
    %c5 = arith.constant 5 : index
    %c0_57 = arith.constant 0 : index
    %142 = vector.load %arg2[%c0_56, %c5, %c0_57] : memref<2x8x256xf32, #tpu.memory_space<vmem>>, vector<2x1x256xf32>
    %143 = vector.shape_cast %142 : vector<2x1x256xf32> to vector<2x256xf32>
    %144 = vector.shape_cast %143 : vector<2x256xf32> to vector<2x1x256xf32>
    %c0_58 = arith.constant 0 : index
    %c5_59 = arith.constant 5 : index
    %c0_60 = arith.constant 0 : index
    %145 = vector.load %arg3[%c0_58, %c5_59, %c0_60] : memref<2x8x256xf32, #tpu.memory_space<vmem>>, vector<2x1x256xf32>
    %146 = vector.shape_cast %145 : vector<2x1x256xf32> to vector<2x256xf32>
    %147 = vector.shape_cast %146 : vector<2x256xf32> to vector<2x1x256xf32>
    %c5_61 = arith.constant 5 : index
    %c0_62 = arith.constant 0 : index
    %c0_63 = arith.constant 0 : index
    %148 = vector.load %arg4[%c5_61, %c0_62, %c0_63] : memref<8x8x256xf32, #tpu.memory_space<vmem>>, vector<1x8x256xf32>
    %149 = vector.shape_cast %148 : vector<1x8x256xf32> to vector<8x256xf32>
    %150 = vector.shape_cast %149 : vector<8x256xf32> to vector<1x8x256xf32>
    %c5_64 = arith.constant 5 : index
    %c0_65 = arith.constant 0 : index
    %c0_66 = arith.constant 0 : index
    %151 = vector.load %arg5[%c5_64, %c0_65, %c0_66] : memref<8x8x256xf32, #tpu.memory_space<vmem>>, vector<1x8x256xf32>
    %152 = vector.shape_cast %151 : vector<1x8x256xf32> to vector<8x256xf32>
    %153 = vector.shape_cast %152 : vector<8x256xf32> to vector<1x8x256xf32>
    %154 = vector.broadcast %144 : vector<2x1x256xf32> to vector<2x8x256xf32>
    %155 = vector.broadcast %150 : vector<1x8x256xf32> to vector<2x8x256xf32>
    %156 = arith.mulf %154, %155 : vector<2x8x256xf32>
    %157 = vector.broadcast %147 : vector<2x1x256xf32> to vector<2x8x256xf32>
    %158 = vector.broadcast %153 : vector<1x8x256xf32> to vector<2x8x256xf32>
    %159 = arith.mulf %157, %158 : vector<2x8x256xf32>
    %160 = arith.subf %156, %159 : vector<2x8x256xf32>
    %161 = arith.addf %133, %160 : vector<2x8x256xf32>
    %162 = vector.broadcast %144 : vector<2x1x256xf32> to vector<2x8x256xf32>
    %163 = vector.broadcast %153 : vector<1x8x256xf32> to vector<2x8x256xf32>
    %164 = arith.mulf %162, %163 : vector<2x8x256xf32>
    %165 = vector.broadcast %147 : vector<2x1x256xf32> to vector<2x8x256xf32>
    %166 = vector.broadcast %150 : vector<1x8x256xf32> to vector<2x8x256xf32>
    %167 = arith.mulf %165, %166 : vector<2x8x256xf32>
    %168 = arith.addf %164, %167 : vector<2x8x256xf32>
    %169 = arith.addf %141, %168 : vector<2x8x256xf32>
    %c0_67 = arith.constant 0 : index
    %c6 = arith.constant 6 : index
    %c0_68 = arith.constant 0 : index
    %170 = vector.load %arg2[%c0_67, %c6, %c0_68] : memref<2x8x256xf32, #tpu.memory_space<vmem>>, vector<2x1x256xf32>
    %171 = vector.shape_cast %170 : vector<2x1x256xf32> to vector<2x256xf32>
    %172 = vector.shape_cast %171 : vector<2x256xf32> to vector<2x1x256xf32>
    %c0_69 = arith.constant 0 : index
    %c6_70 = arith.constant 6 : index
    %c0_71 = arith.constant 0 : index
    %173 = vector.load %arg3[%c0_69, %c6_70, %c0_71] : memref<2x8x256xf32, #tpu.memory_space<vmem>>, vector<2x1x256xf32>
    %174 = vector.shape_cast %173 : vector<2x1x256xf32> to vector<2x256xf32>
    %175 = vector.shape_cast %174 : vector<2x256xf32> to vector<2x1x256xf32>
    %c6_72 = arith.constant 6 : index
    %c0_73 = arith.constant 0 : index
    %c0_74 = arith.constant 0 : index
    %176 = vector.load %arg4[%c6_72, %c0_73, %c0_74] : memref<8x8x256xf32, #tpu.memory_space<vmem>>, vector<1x8x256xf32>
    %177 = vector.shape_cast %176 : vector<1x8x256xf32> to vector<8x256xf32>
    %178 = vector.shape_cast %177 : vector<8x256xf32> to vector<1x8x256xf32>
    %c6_75 = arith.constant 6 : index
    %c0_76 = arith.constant 0 : index
    %c0_77 = arith.constant 0 : index
    %179 = vector.load %arg5[%c6_75, %c0_76, %c0_77] : memref<8x8x256xf32, #tpu.memory_space<vmem>>, vector<1x8x256xf32>
    %180 = vector.shape_cast %179 : vector<1x8x256xf32> to vector<8x256xf32>
    %181 = vector.shape_cast %180 : vector<8x256xf32> to vector<1x8x256xf32>
    %182 = vector.broadcast %172 : vector<2x1x256xf32> to vector<2x8x256xf32>
    %183 = vector.broadcast %178 : vector<1x8x256xf32> to vector<2x8x256xf32>
    %184 = arith.mulf %182, %183 : vector<2x8x256xf32>
    %185 = vector.broadcast %175 : vector<2x1x256xf32> to vector<2x8x256xf32>
    %186 = vector.broadcast %181 : vector<1x8x256xf32> to vector<2x8x256xf32>
    %187 = arith.mulf %185, %186 : vector<2x8x256xf32>
    %188 = arith.subf %184, %187 : vector<2x8x256xf32>
    %189 = arith.addf %161, %188 : vector<2x8x256xf32>
    %190 = vector.broadcast %172 : vector<2x1x256xf32> to vector<2x8x256xf32>
    %191 = vector.broadcast %181 : vector<1x8x256xf32> to vector<2x8x256xf32>
    %192 = arith.mulf %190, %191 : vector<2x8x256xf32>
    %193 = vector.broadcast %175 : vector<2x1x256xf32> to vector<2x8x256xf32>
    %194 = vector.broadcast %178 : vector<1x8x256xf32> to vector<2x8x256xf32>
    %195 = arith.mulf %193, %194 : vector<2x8x256xf32>
    %196 = arith.addf %192, %195 : vector<2x8x256xf32>
    %197 = arith.addf %169, %196 : vector<2x8x256xf32>
    %c0_78 = arith.constant 0 : index
    %c7 = arith.constant 7 : index
    %c0_79 = arith.constant 0 : index
    %198 = vector.load %arg2[%c0_78, %c7, %c0_79] : memref<2x8x256xf32, #tpu.memory_space<vmem>>, vector<2x1x256xf32>
    %199 = vector.shape_cast %198 : vector<2x1x256xf32> to vector<2x256xf32>
    %200 = vector.shape_cast %199 : vector<2x256xf32> to vector<2x1x256xf32>
    %c0_80 = arith.constant 0 : index
    %c7_81 = arith.constant 7 : index
    %c0_82 = arith.constant 0 : index
    %201 = vector.load %arg3[%c0_80, %c7_81, %c0_82] : memref<2x8x256xf32, #tpu.memory_space<vmem>>, vector<2x1x256xf32>
    %202 = vector.shape_cast %201 : vector<2x1x256xf32> to vector<2x256xf32>
    %203 = vector.shape_cast %202 : vector<2x256xf32> to vector<2x1x256xf32>
    %c7_83 = arith.constant 7 : index
    %c0_84 = arith.constant 0 : index
    %c0_85 = arith.constant 0 : index
    %204 = vector.load %arg4[%c7_83, %c0_84, %c0_85] : memref<8x8x256xf32, #tpu.memory_space<vmem>>, vector<1x8x256xf32>
    %205 = vector.shape_cast %204 : vector<1x8x256xf32> to vector<8x256xf32>
    %206 = vector.shape_cast %205 : vector<8x256xf32> to vector<1x8x256xf32>
    %c7_86 = arith.constant 7 : index
    %c0_87 = arith.constant 0 : index
    %c0_88 = arith.constant 0 : index
    %207 = vector.load %arg5[%c7_86, %c0_87, %c0_88] : memref<8x8x256xf32, #tpu.memory_space<vmem>>, vector<1x8x256xf32>
    %208 = vector.shape_cast %207 : vector<1x8x256xf32> to vector<8x256xf32>
    %209 = vector.shape_cast %208 : vector<8x256xf32> to vector<1x8x256xf32>
    %210 = vector.broadcast %200 : vector<2x1x256xf32> to vector<2x8x256xf32>
    %211 = vector.broadcast %206 : vector<1x8x256xf32> to vector<2x8x256xf32>
    %212 = arith.mulf %210, %211 : vector<2x8x256xf32>
    %213 = vector.broadcast %203 : vector<2x1x256xf32> to vector<2x8x256xf32>
    %214 = vector.broadcast %209 : vector<1x8x256xf32> to vector<2x8x256xf32>
    %215 = arith.mulf %213, %214 : vector<2x8x256xf32>
    %216 = arith.subf %212, %215 : vector<2x8x256xf32>
    %217 = arith.addf %189, %216 : vector<2x8x256xf32>
    %218 = vector.broadcast %200 : vector<2x1x256xf32> to vector<2x8x256xf32>
    %219 = vector.broadcast %209 : vector<1x8x256xf32> to vector<2x8x256xf32>
    %220 = arith.mulf %218, %219 : vector<2x8x256xf32>
    %221 = vector.broadcast %203 : vector<2x1x256xf32> to vector<2x8x256xf32>
    %222 = vector.broadcast %206 : vector<1x8x256xf32> to vector<2x8x256xf32>
    %223 = arith.mulf %221, %222 : vector<2x8x256xf32>
    %224 = arith.addf %220, %223 : vector<2x8x256xf32>
    %225 = arith.addf %197, %224 : vector<2x8x256xf32>
    %c0_89 = arith.constant 0 : index
    %c0_90 = arith.constant 0 : index
    %c0_91 = arith.constant 0 : index
    %226 = vector.load %arg6[%c0_89, %c0_90, %c0_91] : memref<2x8x256xf32, #tpu.memory_space<vmem>>, vector<2x8x256xf32>
    tpu.vector_store %arg6[%c0_89, %c0_90, %c0_91], %217 {strides = array<i32>} : memref<2x8x256xf32, #tpu.memory_space<vmem>>, vector<2x8x256xf32>,
    %c0_92 = arith.constant 0 : index
    %c0_93 = arith.constant 0 : index
    %c0_94 = arith.constant 0 : index
    %227 = vector.load %arg7[%c0_92, %c0_93, %c0_94] : memref<2x8x256xf32, #tpu.memory_space<vmem>>, vector<2x8x256xf32>
    tpu.vector_store %arg7[%c0_92, %c0_93, %c0_94], %225 {strides = array<i32>} : memref<2x8x256xf32, #tpu.memory_space<vmem>>, vector<2x8x256xf32>,
    return
  }
  func.func @transform_0(%arg0: i32, %arg1: i32) -> (i32, i32, i32) {
    %c0_i32 = arith.constant 0 : i32
    %c0_i32_0 = arith.constant 0 : i32
    %c0_i32_1 = arith.constant 0 : i32
    return %c0_i32, %c0_i32_0, %arg1 : i32, i32, i32
  }
  func.func @transform_1(%arg0: i32, %arg1: i32) -> (i32, i32, i32) {
    %c0_i32 = arith.constant 0 : i32
    %c0_i32_0 = arith.constant 0 : i32
    %c0_i32_1 = arith.constant 0 : i32
    return %c0_i32, %c0_i32_0, %arg1 : i32, i32, i32
  }
  func.func @transform_2(%arg0: i32, %arg1: i32) -> (i32, i32, i32) {
    %c0_i32 = arith.constant 0 : i32
    %c0_i32_0 = arith.constant 0 : i32
    return %c0_i32, %arg0, %arg1 : i32, i32, i32
  }
  func.func @transform_3(%arg0: i32, %arg1: i32) -> (i32, i32, i32) {
    %c0_i32 = arith.constant 0 : i32
    %c0_i32_0 = arith.constant 0 : i32
    return %c0_i32, %arg0, %arg1 : i32, i32, i32
  }
  func.func @transform_4(%arg0: i32, %arg1: i32) -> (i32, i32, i32) {
    %c0_i32 = arith.constant 0 : i32
    %c0_i32_0 = arith.constant 0 : i32
    return %c0_i32, %arg0, %arg1 : i32, i32, i32
  }
  func.func @transform_5(%arg0: i32, %arg1: i32) -> (i32, i32, i32) {
    %c0_i32 = arith.constant 0 : i32
    %c0_i32_0 = arith.constant 0 : i32
    return %c0_i32, %arg0, %arg1 : i32, i32, i32
  }
}

</mosaic_0001>

<llo_original>
// kernel: tpu_custom_call.1
$region0: #{tpu_custom_call.1}
  #allocation0 [shape = 'u32[]', space=smem, size = 0x4, offset = 0x4, fixed_abs, tag = 'smem constant byte address 0x4 - core index']
  #allocation1 [shape = 'u32[72,128]{1,0:T(1,128)}', space=vmem, size = 0x9000, scoped, tag = 'internal scratch']
  %s0 = inlined_call_operand.hbm [shape: f32[2,8,256], index: 0, kind: input, shape index: {}]
  %s1 = inlined_call_operand.hbm [shape: f32[2,8,256], index: 1, kind: input, shape index: {}]
  %s2 = inlined_call_operand.hbm [shape: f32[8,8,256], index: 2, kind: input, shape index: {}]
  %s3 = inlined_call_operand.hbm [shape: f32[8,8,256], index: 3, kind: input, shape index: {}]
  %s4 = inlined_call_operand.hbm [shape: f32[2,8,256], index: 4, kind: output, shape index: {0}]
  %s5 = inlined_call_operand.hbm [shape: f32[2,8,256], index: 5, kind: output, shape index: {1}]
  %6 = xla_tuple %s4, %s5
  %s7 = sld [smem:[#allocation0]]
  $region50: #{tpu_custom_call.1} parent=0
    _
  %s9 = ssub.s32 1, %s7
  %s10 = scalar_select 0, %s9, %s7
  $region1: #{tpu_custom_call.1} parent=0
    #allocation2 [shape = 'u8[16384]{0}', space=vmem, size = 0x4000, scoped, tag = 'input window, operand 0, single buffered']
    #allocation3 [shape = 's32[1]{0}', space=sflag, size = 0x4, scoped, tag = 'scoped memory for tpu_custom_call.1']
    #allocation4 [shape = 's32[1]{0}', space=sflag, size = 0x4, scoped, tag = 'scoped memory for tpu_custom_call.1']
    #allocation5 [shape = 'u8[16384]{0}', space=vmem, size = 0x4000, scoped, tag = 'input window, operand 1, single buffered']
    #allocation6 [shape = 's32[1]{0}', space=sflag, size = 0x4, scoped, tag = 'scoped memory for tpu_custom_call.1']
    #allocation7 [shape = 'u8[65536]{0}', space=vmem, size = 0x10000, scoped, tag = 'input window, operand 2, single buffered']
    #allocation8 [shape = 'u8[65536]{0}', space=vmem, size = 0x10000, scoped, tag = 'input window, operand 3, single buffered']
    #allocation9 [shape = 's32[1]{0}', space=sflag, size = 0x4, scoped, tag = 'scoped memory for tpu_custom_call.1']
    #allocation10 [shape = 'u8[16384]{0}', space=vmem, size = 0x4000, scoped, tag = 'output window, operand 0, single buffered']
    #allocation11 [shape = 'u8[16384]{0}', space=vmem, size = 0x4000, scoped, tag = 'output window, operand 1, single buffered']
    #allocation12 [shape = 's32[1]{0}', space=sflag, size = 0x4, scoped, tag = 'scoped memory for tpu_custom_call.1']
    %11 = vsyncpa [#allocation3], 0
    %12 = vsyncpa [#allocation6], 0
    %13 = vsyncpa [#allocation9], 0
    %14 = vsyncpa [#allocation4], 0
    %15 = vsyncpa [#allocation12], 0
    // Predicated region
    $region2: #{tpu_custom_call.1} parent=1 // pred_check
      _
    $region3: #{tpu_custom_call.1} parent=1 // pred_check_branch
      %17 = sbr.rel (0) target = $region5
    $region4: #{tpu_custom_call.1} parent=1 // pred_region
      %19 = vsyncadd [#allocation3], 0
      %s20 = sshll.u32 %s0, 4
      %s21 = int_to_ptr.hbm [resolvable:$true] %s20
      %s22 = sshll.u32 [#allocation2], 4
      %s23 = int_to_ptr.vmem [resolvable:$true] %s22
      %28 = dma.hbm_to_vmem [thread:$0]  %s21, 512, %s23, [#allocation3], 256, 256, 16
    $region5: #{tpu_custom_call.1} parent=1 // pred_fallthru
      _
    // Predicated region
    $region6: #{tpu_custom_call.1} parent=1 // pred_check
      _
    $region7: #{tpu_custom_call.1} parent=1 // pred_check_branch
      %30 = sbr.rel (0) target = $region9
    $region8: #{tpu_custom_call.1} parent=1 // pred_region
      %32 = vsyncadd [#allocation6], 0
      %s33 = sshll.u32 %s1, 4
      %s34 = int_to_ptr.hbm [resolvable:$true] %s33
      %s35 = sshll.u32 [#allocation5], 4
      %s36 = int_to_ptr.vmem [resolvable:$true] %s35
      %41 = dma.hbm_to_vmem [thread:$0]  %s34, 512, %s36, [#allocation6], 256, 256, 16
    $region9: #{tpu_custom_call.1} parent=1 // pred_fallthru
      _
    // Predicated region
    $region10: #{tpu_custom_call.1} parent=1 // pred_check
      _
    $region11: #{tpu_custom_call.1} parent=1 // pred_check_branch
      %43 = sbr.rel (0) target = $region13
    $region12: #{tpu_custom_call.1} parent=1 // pred_region
      %45 = vsyncadd [#allocation6], 0
      %s46 = sshll.u32 %s2, 4
      %s47 = int_to_ptr.hbm [resolvable:$true] %s46
      %s48 = sshll.u32 [#allocation7], 4
      %s49 = int_to_ptr.vmem [resolvable:$true] %s48
      %54 = dma.hbm_to_vmem [thread:$0]  %s47, 2048, %s49, [#allocation6], 256, 256, 16
    $region13: #{tpu_custom_call.1} parent=1 // pred_fallthru
      _
    // Predicated region
    $region14: #{tpu_custom_call.1} parent=1 // pred_check
      _
    $region15: #{tpu_custom_call.1} parent=1 // pred_check_branch
      %56 = sbr.rel (0) target = $region17
    $region16: #{tpu_custom_call.1} parent=1 // pred_region
      %58 = vsyncadd [#allocation9], 0
      %s59 = sshll.u32 %s3, 4
      %s60 = int_to_ptr.hbm [resolvable:$true] %s59
      %s61 = sshll.u32 [#allocation8], 4
      %s62 = int_to_ptr.vmem [resolvable:$true] %s61
      %67 = dma.hbm_to_vmem [thread:$0]  %s60, 2048, %s62, [#allocation9], 256, 256, 16
    $region17: #{tpu_custom_call.1} parent=1 // pred_fallthru
      _
    // Predicated region
    $region18: #{tpu_custom_call.1} parent=1 // pred_check
      _
    $region19: #{tpu_custom_call.1} parent=1 // pred_check_branch
      %69 = sbr.rel (0) target = $region21
    $region20: #{tpu_custom_call.1} parent=1 // pred_region
      %71 = dma.done [#allocation3], 512
    $region21: #{tpu_custom_call.1} parent=1 // pred_fallthru
      _
    // Predicated region
    $region22: #{tpu_custom_call.1} parent=1 // pred_check
      _
    $region23: #{tpu_custom_call.1} parent=1 // pred_check_branch
      %73 = sbr.rel (0) target = $region25
    $region24: #{tpu_custom_call.1} parent=1 // pred_region
      %75 = dma.done [#allocation6], 512
    $region25: #{tpu_custom_call.1} parent=1 // pred_fallthru
      _
    // Predicated region
    $region26: #{tpu_custom_call.1} parent=1 // pred_check
      _
    $region27: #{tpu_custom_call.1} parent=1 // pred_check_branch
      %77 = sbr.rel (0) target = $region29
    $region28: #{tpu_custom_call.1} parent=1 // pred_region
      %79 = dma.done [#allocation6], 2048
    $region29: #{tpu_custom_call.1} parent=1 // pred_fallthru
      _
    // Predicated region
    $region30: #{tpu_custom_call.1} parent=1 // pred_check
      _
    $region31: #{tpu_custom_call.1} parent=1 // pred_check_branch
      %81 = sbr.rel (0) target = $region33
    $region32: #{tpu_custom_call.1} parent=1 // pred_region
      %83 = dma.done [#allocation9], 2048
    $region33: #{tpu_custom_call.1} parent=1 // pred_fallthru
      _
    %v84 = vld [vmem:[#allocation2] ss:$8 sm:$0x3]
    %s85 = scalar_lea.vmem [#allocation2], 16
    %v86 = vld [vmem:[%s85] ss:$8 sm:$0x3]
    %v87 = vld [vmem:[#allocation5] ss:$8 sm:$0x3]
    %s88 = scalar_lea.vmem [#allocation5], 16
    %v89 = vld [vmem:[%s88] ss:$8 sm:$0x3]
    %v90 = vld [vmem:[#allocation7] sm:$0xff]
    %v91 = vld [vmem:[#allocation7 + $0x8] sm:$0xff]
    %v92 = vld [vmem:[#allocation8] sm:$0xff]
    %v93 = vld [vmem:[#allocation8 + $0x8] sm:$0xff]
    %v96 = vperm.slane %v84, 0
    %v97 = vperm.slane %v84, 1
    %v98 = vperm.slane %v86, 0
    %v99 = vperm.slane %v86, 1
    %v104 = vmul.f32 %v96, %v90
    %v105 = vmul.f32 %v97, %v91
    %v106 = vmul.f32 %v98, %v90
    %v107 = vmul.f32 %v99, %v91
    %v110 = vperm.slane %v87, 0
    %v111 = vperm.slane %v87, 1
    %v112 = vperm.slane %v89, 0
    %v113 = vperm.slane %v89, 1
    %v118 = vmul.f32 %v110, %v92
    %v119 = vmul.f32 %v111, %v93
    %v120 = vmul.f32 %v112, %v92
    %v121 = vmul.f32 %v113, %v93
    %v122 = vsub.f32 %v104, %v118
    %v123 = vsub.f32 %v105, %v119
    %v124 = vsub.f32 %v106, %v120
    %v125 = vsub.f32 %v107, %v121
    %v126 = vadd.f32 %v122, 0.0
    %v127 = vadd.f32 %v123, 0.0
    %v128 = vadd.f32 %v124, 0.0
    %v129 = vadd.f32 %v125, 0.0
    %v130 = vmul.f32 %v96, %v92
    %v131 = vmul.f32 %v97, %v93
    %v132 = vmul.f32 %v98, %v92
    %v133 = vmul.f32 %v99, %v93
    %v134 = vmul.f32 %v110, %v90
    %v135 = vmul.f32 %v111, %v91
    %v136 = vmul.f32 %v112, %v90
    %v137 = vmul.f32 %v113, %v91
    %v138 = vadd.f32 %v130, %v134
    %v139 = vadd.f32 %v131, %v135
    %v140 = vadd.f32 %v132, %v136
    %v141 = vadd.f32 %v133, %v137
    %v142 = vadd.f32 %v138, 0.0
    %v143 = vadd.f32 %v139, 0.0
    %v144 = vadd.f32 %v140, 0.0
    %v145 = vadd.f32 %v141, 0.0
    %s146 = scalar_lea.vmem [#allocation2], 1
    %v147 = vld [vmem:[%s146] ss:$8 sm:$0x3]
    %s148 = scalar_lea.vmem [#allocation2], 17
    %v149 = vld [vmem:[%s148] ss:$8 sm:$0x3]
    %s150 = scalar_lea.vmem [#allocation5], 1
    %v151 = vld [vmem:[%s150] ss:$8 sm:$0x3]
    %s152 = scalar_lea.vmem [#allocation5], 17
    %v153 = vld [vmem:[%s152] ss:$8 sm:$0x3]
    %s154 = scalar_lea.vmem [#allocation7], 16
    %v155 = vld [vmem:[%s154] sm:$0xff]
    %v156 = vld [vmem:[%s154 + $0x8] sm:$0xff]
    %s157 = scalar_lea.vmem [#allocation8], 16
    %v158 = vld [vmem:[%s157] sm:$0xff]
    %v159 = vld [vmem:[%s157 + $0x8] sm:$0xff]
    %v162 = vperm.slane %v147, 0
    %v163 = vperm.slane %v147, 1
    %v164 = vperm.slane %v149, 0
    %v165 = vperm.slane %v149, 1
    %v170 = vmul.f32 %v162, %v155
    %v171 = vmul.f32 %v163, %v156
    %v172 = vmul.f32 %v164, %v155
    %v173 = vmul.f32 %v165, %v156
    %v176 = vperm.slane %v151, 0
    %v177 = vperm.slane %v151, 1
    %v178 = vperm.slane %v153, 0
    %v179 = vperm.slane %v153, 1
    %v184 = vmul.f32 %v176, %v158
    %v185 = vmul.f32 %v177, %v159
    %v186 = vmul.f32 %v178, %v158
    %v187 = vmul.f32 %v179, %v159
    %v188 = vsub.f32 %v170, %v184
    %v189 = vsub.f32 %v171, %v185
    %v190 = vsub.f32 %v172, %v186
    %v191 = vsub.f32 %v173, %v187
    %v192 = vadd.f32 %v126, %v188
    %v193 = vadd.f32 %v127, %v189
    %v194 = vadd.f32 %v128, %v190
    %v195 = vadd.f32 %v129, %v191
    %v196 = vmul.f32 %v162, %v158
    %v197 = vmul.f32 %v163, %v159
    %v198 = vmul.f32 %v164, %v158
    %v199 = vmul.f32 %v165, %v159
    %v200 = vmul.f32 %v176, %v155
    %v201 = vmul.f32 %v177, %v156
    %v202 = vmul.f32 %v178, %v155
    %v203 = vmul.f32 %v179, %v156
    %v204 = vadd.f32 %v196, %v200
    %v205 = vadd.f32 %v197, %v201
    %v206 = vadd.f32 %v198, %v202
    %v207 = vadd.f32 %v199, %v203
    %v208 = vadd.f32 %v142, %v204
    %v209 = vadd.f32 %v143, %v205
    %v210 = vadd.f32 %v144, %v206
    %v211 = vadd.f32 %v145, %v207
    %s212 = scalar_lea.vmem [#allocation2], 2
    %v213 = vld [vmem:[%s212] ss:$8 sm:$0x3]
    %s214 = scalar_lea.vmem [#allocation2], 18
    %v215 = vld [vmem:[%s214] ss:$8 sm:$0x3]
    %s216 = scalar_lea.vmem [#allocation5], 2
    %v217 = vld [vmem:[%s216] ss:$8 sm:$0x3]
    %s218 = scalar_lea.vmem [#allocation5], 18
    %v219 = vld [vmem:[%s218] ss:$8 sm:$0x3]
    %s220 = scalar_lea.vmem [#allocation7], 32
    %v221 = vld [vmem:[%s220] sm:$0xff]
    %v222 = vld [vmem:[%s220 + $0x8] sm:$0xff]
    %s223 = scalar_lea.vmem [#allocation8], 32
    %v224 = vld [vmem:[%s223] sm:$0xff]
    %v225 = vld [vmem:[%s223 + $0x8] sm:$0xff]
    %v228 = vperm.slane %v213, 0
    %v229 = vperm.slane %v213, 1
    %v230 = vperm.slane %v215, 0
    %v231 = vperm.slane %v215, 1
    %v236 = vmul.f32 %v228, %v221
    %v237 = vmul.f32 %v229, %v222
    %v238 = vmul.f32 %v230, %v221
    %v239 = vmul.f32 %v231, %v222
    %v242 = vperm.slane %v217, 0
    %v243 = vperm.slane %v217, 1
    %v244 = vperm.slane %v219, 0
    %v245 = vperm.slane %v219, 1
    %v250 = vmul.f32 %v242, %v224
    %v251 = vmul.f32 %v243, %v225
    %v252 = vmul.f32 %v244, %v224
    %v253 = vmul.f32 %v245, %v225
    %v254 = vsub.f32 %v236, %v250
    %v255 = vsub.f32 %v237, %v251
    %v256 = vsub.f32 %v238, %v252
    %v257 = vsub.f32 %v239, %v253
    %v258 = vadd.f32 %v192, %v254
    %v259 = vadd.f32 %v193, %v255
    %v260 = vadd.f32 %v194, %v256
    %v261 = vadd.f32 %v195, %v257
    %v262 = vmul.f32 %v228, %v224
    %v263 = vmul.f32 %v229, %v225
    %v264 = vmul.f32 %v230, %v224
    %v265 = vmul.f32 %v231, %v225
    %v266 = vmul.f32 %v242, %v221
    %v267 = vmul.f32 %v243, %v222
    %v268 = vmul.f32 %v244, %v221
    %v269 = vmul.f32 %v245, %v222
    %v270 = vadd.f32 %v262, %v266
    %v271 = vadd.f32 %v263, %v267
    %v272 = vadd.f32 %v264, %v268
    %v273 = vadd.f32 %v265, %v269
    %v274 = vadd.f32 %v208, %v270
    %v275 = vadd.f32 %v209, %v271
    %v276 = vadd.f32 %v210, %v272
    %v277 = vadd.f32 %v211, %v273
    %s278 = scalar_lea.vmem [#allocation2], 3
    %v279 = vld [vmem:[%s278] ss:$8 sm:$0x3]
    %s280 = scalar_lea.vmem [#allocation2], 19
    %v281 = vld [vmem:[%s280] ss:$8 sm:$0x3]
    %s282 = scalar_lea.vmem [#allocation5], 3
    %v283 = vld [vmem:[%s282] ss:$8 sm:$0x3]
    %s284 = scalar_lea.vmem [#allocation5], 19
    %v285 = vld [vmem:[%s284] ss:$8 sm:$0x3]
    %s286 = scalar_lea.vmem [#allocation7], 48
    %v287 = vld [vmem:[%s286] sm:$0xff]
    %v288 = vld [vmem:[%s286 + $0x8] sm:$0xff]
    %s289 = scalar_lea.vmem [#allocation8], 48
    %v290 = vld [vmem:[%s289] sm:$0xff]
    %v291 = vld [vmem:[%s289 + $0x8] sm:$0xff]
    %v294 = vperm.slane %v279, 0
    %v295 = vperm.slane %v279, 1
    %v296 = vperm.slane %v281, 0
    %v297 = vperm.slane %v281, 1
    %v302 = vmul.f32 %v294, %v287
    %v303 = vmul.f32 %v295, %v288
    %v304 = vmul.f32 %v296, %v287
    %v305 = vmul.f32 %v297, %v288
    %v308 = vperm.slane %v283, 0
    %v309 = vperm.slane %v283, 1
    %v310 = vperm.slane %v285, 0
    %v311 = vperm.slane %v285, 1
    %v316 = vmul.f32 %v308, %v290
    %v317 = vmul.f32 %v309, %v291
    %v318 = vmul.f32 %v310, %v290
    %v319 = vmul.f32 %v311, %v291
    %v320 = vsub.f32 %v302, %v316
    %v321 = vsub.f32 %v303, %v317
    %v322 = vsub.f32 %v304, %v318
    %v323 = vsub.f32 %v305, %v319
    %v324 = vadd.f32 %v258, %v320
    %v325 = vadd.f32 %v259, %v321
    %v326 = vadd.f32 %v260, %v322
    %v327 = vadd.f32 %v261, %v323
    %v328 = vmul.f32 %v294, %v290
    %v329 = vmul.f32 %v295, %v291
    %v330 = vmul.f32 %v296, %v290
    %v331 = vmul.f32 %v297, %v291
    %v332 = vmul.f32 %v308, %v287
    %v333 = vmul.f32 %v309, %v288
    %v334 = vmul.f32 %v310, %v287
    %v335 = vmul.f32 %v311, %v288
    %v336 = vadd.f32 %v328, %v332
    %v337 = vadd.f32 %v329, %v333
    %v338 = vadd.f32 %v330, %v334
    %v339 = vadd.f32 %v331, %v335
    %v340 = vadd.f32 %v274, %v336
    %v341 = vadd.f32 %v275, %v337
    %v342 = vadd.f32 %v276, %v338
    %v343 = vadd.f32 %v277, %v339
    %s344 = scalar_lea.vmem [#allocation2], 4
    %v345 = vld [vmem:[%s344] ss:$8 sm:$0x3]
    %s346 = scalar_lea.vmem [#allocation2], 20
    %v347 = vld [vmem:[%s346] ss:$8 sm:$0x3]
    %s348 = scalar_lea.vmem [#allocation5], 4
    %v349 = vld [vmem:[%s348] ss:$8 sm:$0x3]
    %s350 = scalar_lea.vmem [#allocation5], 20
    %v351 = vld [vmem:[%s350] ss:$8 sm:$0x3]
    %s352 = scalar_lea.vmem [#allocation7], 64
    %v353 = vld [vmem:[%s352] sm:$0xff]
    %v354 = vld [vmem:[%s352 + $0x8] sm:$0xff]
    %s355 = scalar_lea.vmem [#allocation8], 64
    %v356 = vld [vmem:[%s355] sm:$0xff]
    %v357 = vld [vmem:[%s355 + $0x8] sm:$0xff]
    %v360 = vperm.slane %v345, 0
    %v361 = vperm.slane %v345, 1
    %v362 = vperm.slane %v347, 0
    %v363 = vperm.slane %v347, 1
    %v368 = vmul.f32 %v360, %v353
    %v369 = vmul.f32 %v361, %v354
    %v370 = vmul.f32 %v362, %v353
    %v371 = vmul.f32 %v363, %v354
    %v374 = vperm.slane %v349, 0
    %v375 = vperm.slane %v349, 1
    %v376 = vperm.slane %v351, 0
    %v377 = vperm.slane %v351, 1
    %v382 = vmul.f32 %v374, %v356
    %v383 = vmul.f32 %v375, %v357
    %v384 = vmul.f32 %v376, %v356
    %v385 = vmul.f32 %v377, %v357
    %v386 = vsub.f32 %v368, %v382
    %v387 = vsub.f32 %v369, %v383
    %v388 = vsub.f32 %v370, %v384
    %v389 = vsub.f32 %v371, %v385
    %v390 = vadd.f32 %v324, %v386
    %v391 = vadd.f32 %v325, %v387
    %v392 = vadd.f32 %v326, %v388
    %v393 = vadd.f32 %v327, %v389
    %v394 = vmul.f32 %v360, %v356
    %v395 = vmul.f32 %v361, %v357
    %v396 = vmul.f32 %v362, %v356
    %v397 = vmul.f32 %v363, %v357
    %v398 = vmul.f32 %v374, %v353
    %v399 = vmul.f32 %v375, %v354
    %v400 = vmul.f32 %v376, %v353
    %v401 = vmul.f32 %v377, %v354
    %v402 = vadd.f32 %v394, %v398
    %v403 = vadd.f32 %v395, %v399
    %v404 = vadd.f32 %v396, %v400
    %v405 = vadd.f32 %v397, %v401
    %v406 = vadd.f32 %v340, %v402
    %v407 = vadd.f32 %v341, %v403
    %v408 = vadd.f32 %v342, %v404
    %v409 = vadd.f32 %v343, %v405
    %s410 = scalar_lea.vmem [#allocation2], 5
    %v411 = vld [vmem:[%s410] ss:$8 sm:$0x3]
    %s412 = scalar_lea.vmem [#allocation2], 21
    %v413 = vld [vmem:[%s412] ss:$8 sm:$0x3]
    %s414 = scalar_lea.vmem [#allocation5], 5
    %v415 = vld [vmem:[%s414] ss:$8 sm:$0x3]
    %s416 = scalar_lea.vmem [#allocation5], 21
    %v417 = vld [vmem:[%s416] ss:$8 sm:$0x3]
    %s418 = scalar_lea.vmem [#allocation7], 80
    %v419 = vld [vmem:[%s418] sm:$0xff]
    %v420 = vld [vmem:[%s418 + $0x8] sm:$0xff]
    %s421 = scalar_lea.vmem [#allocation8], 80
    %v422 = vld [vmem:[%s421] sm:$0xff]
    %v423 = vld [vmem:[%s421 + $0x8] sm:$0xff]
    %v426 = vperm.slane %v411, 0
    %v427 = vperm.slane %v411, 1
    %v428 = vperm.slane %v413, 0
    %v429 = vperm.slane %v413, 1
    %v434 = vmul.f32 %v426, %v419
    %v435 = vmul.f32 %v427, %v420
    %v436 = vmul.f32 %v428, %v419
    %v437 = vmul.f32 %v429, %v420
    %v440 = vperm.slane %v415, 0
    %v441 = vperm.slane %v415, 1
    %v442 = vperm.slane %v417, 0
    %v443 = vperm.slane %v417, 1
    %v448 = vmul.f32 %v440, %v422
    %v449 = vmul.f32 %v441, %v423
    %v450 = vmul.f32 %v442, %v422
    %v451 = vmul.f32 %v443, %v423
    %v452 = vsub.f32 %v434, %v448
    %v453 = vsub.f32 %v435, %v449
    %v454 = vsub.f32 %v436, %v450
    %v455 = vsub.f32 %v437, %v451
    %v456 = vadd.f32 %v390, %v452
    %v457 = vadd.f32 %v391, %v453
    %v458 = vadd.f32 %v392, %v454
    %v459 = vadd.f32 %v393, %v455
    %v460 = vmul.f32 %v426, %v422
    %v461 = vmul.f32 %v427, %v423
    %v462 = vmul.f32 %v428, %v422
    %v463 = vmul.f32 %v429, %v423
    %v464 = vmul.f32 %v440, %v419
    %v465 = vmul.f32 %v441, %v420
    %v466 = vmul.f32 %v442, %v419
    %v467 = vmul.f32 %v443, %v420
    %v468 = vadd.f32 %v460, %v464
    %v469 = vadd.f32 %v461, %v465
    %v470 = vadd.f32 %v462, %v466
    %v471 = vadd.f32 %v463, %v467
    %v472 = vadd.f32 %v406, %v468
    %v473 = vadd.f32 %v407, %v469
    %v474 = vadd.f32 %v408, %v470
    %v475 = vadd.f32 %v409, %v471
    %s476 = scalar_lea.vmem [#allocation2], 6
    %v477 = vld [vmem:[%s476] ss:$8 sm:$0x3]
    %s478 = scalar_lea.vmem [#allocation2], 22
    %v479 = vld [vmem:[%s478] ss:$8 sm:$0x3]
    %s480 = scalar_lea.vmem [#allocation5], 6
    %v481 = vld [vmem:[%s480] ss:$8 sm:$0x3]
    %s482 = scalar_lea.vmem [#allocation5], 22
    %v483 = vld [vmem:[%s482] ss:$8 sm:$0x3]
    %s484 = scalar_lea.vmem [#allocation7], 96
    %v485 = vld [vmem:[%s484] sm:$0xff]
    %v486 = vld [vmem:[%s484 + $0x8] sm:$0xff]
    %s487 = scalar_lea.vmem [#allocation8], 96
    %v488 = vld [vmem:[%s487] sm:$0xff]
    %v489 = vld [vmem:[%s487 + $0x8] sm:$0xff]
    %v492 = vperm.slane %v477, 0
    %v493 = vperm.slane %v477, 1
    %v494 = vperm.slane %v479, 0
    %v495 = vperm.slane %v479, 1
    %v500 = vmul.f32 %v492, %v485
    %v501 = vmul.f32 %v493, %v486
    %v502 = vmul.f32 %v494, %v485
    %v503 = vmul.f32 %v495, %v486
    %v506 = vperm.slane %v481, 0
    %v507 = vperm.slane %v481, 1
    %v508 = vperm.slane %v483, 0
    %v509 = vperm.slane %v483, 1
    %v514 = vmul.f32 %v506, %v488
    %v515 = vmul.f32 %v507, %v489
    %v516 = vmul.f32 %v508, %v488
    %v517 = vmul.f32 %v509, %v489
    %v518 = vsub.f32 %v500, %v514
    %v519 = vsub.f32 %v501, %v515
    %v520 = vsub.f32 %v502, %v516
    %v521 = vsub.f32 %v503, %v517
    %v522 = vadd.f32 %v456, %v518
    %v523 = vadd.f32 %v457, %v519
    %v524 = vadd.f32 %v458, %v520
    %v525 = vadd.f32 %v459, %v521
    %v526 = vmul.f32 %v492, %v488
    %v527 = vmul.f32 %v493, %v489
    %v528 = vmul.f32 %v494, %v488
    %v529 = vmul.f32 %v495, %v489
    %v530 = vmul.f32 %v506, %v485
    %v531 = vmul.f32 %v507, %v486
    %v532 = vmul.f32 %v508, %v485
    %v533 = vmul.f32 %v509, %v486
    %v534 = vadd.f32 %v526, %v530
    %v535 = vadd.f32 %v527, %v531
    %v536 = vadd.f32 %v528, %v532
    %v537 = vadd.f32 %v529, %v533
    %v538 = vadd.f32 %v472, %v534
    %v539 = vadd.f32 %v473, %v535
    %v540 = vadd.f32 %v474, %v536
    %v541 = vadd.f32 %v475, %v537
    %s542 = scalar_lea.vmem [#allocation2], 7
    %v543 = vld [vmem:[%s542] ss:$8 sm:$0x3]
    %s544 = scalar_lea.vmem [#allocation2], 23
    %v545 = vld [vmem:[%s544] ss:$8 sm:$0x3]
    %s546 = scalar_lea.vmem [#allocation5], 7
    %v547 = vld [vmem:[%s546] ss:$8 sm:$0x3]
    %s548 = scalar_lea.vmem [#allocation5], 23
    %v549 = vld [vmem:[%s548] ss:$8 sm:$0x3]
    %s550 = scalar_lea.vmem [#allocation7], 112
    %v551 = vld [vmem:[%s550] sm:$0xff]
    %v552 = vld [vmem:[%s550 + $0x8] sm:$0xff]
    %s553 = scalar_lea.vmem [#allocation8], 112
    %v554 = vld [vmem:[%s553] sm:$0xff]
    %v555 = vld [vmem:[%s553 + $0x8] sm:$0xff]
    %v558 = vperm.slane %v543, 0
    %v559 = vperm.slane %v543, 1
    %v560 = vperm.slane %v545, 0
    %v561 = vperm.slane %v545, 1
    %v566 = vmul.f32 %v558, %v551
    %v567 = vmul.f32 %v559, %v552
    %v568 = vmul.f32 %v560, %v551
    %v569 = vmul.f32 %v561, %v552
    %v572 = vperm.slane %v547, 0
    %v573 = vperm.slane %v547, 1
    %v574 = vperm.slane %v549, 0
    %v575 = vperm.slane %v549, 1
    %v580 = vmul.f32 %v572, %v554
    %v581 = vmul.f32 %v573, %v555
    %v582 = vmul.f32 %v574, %v554
    %v583 = vmul.f32 %v575, %v555
    %v584 = vsub.f32 %v566, %v580
    %v585 = vsub.f32 %v567, %v581
    %v586 = vsub.f32 %v568, %v582
    %v587 = vsub.f32 %v569, %v583
    %v588 = vadd.f32 %v522, %v584
    %v589 = vadd.f32 %v523, %v585
    %v590 = vadd.f32 %v524, %v586
    %v591 = vadd.f32 %v525, %v587
    %v592 = vmul.f32 %v558, %v554
    %v593 = vmul.f32 %v559, %v555
    %v594 = vmul.f32 %v560, %v554
    %v595 = vmul.f32 %v561, %v555
    %v596 = vmul.f32 %v572, %v551
    %v597 = vmul.f32 %v573, %v552
    %v598 = vmul.f32 %v574, %v551
    %v599 = vmul.f32 %v575, %v552
    %v600 = vadd.f32 %v592, %v596
    %v601 = vadd.f32 %v593, %v597
    %v602 = vadd.f32 %v594, %v598
    %v603 = vadd.f32 %v595, %v599
    %v604 = vadd.f32 %v538, %v600
    %v605 = vadd.f32 %v539, %v601
    %v606 = vadd.f32 %v540, %v602
    %v607 = vadd.f32 %v541, %v603
    %608 = vst [vmem:[#allocation10] sm:$0xff] %v588
    %609 = vst [vmem:[#allocation10 + $0x8] sm:$0xff] %v589
    %610 = vst [vmem:[#allocation10 + $0x10] sm:$0xff] %v590
    %611 = vst [vmem:[#allocation10 + $0x18] sm:$0xff] %v591
    %612 = vst [vmem:[#allocation11] sm:$0xff] %v604
    %613 = vst [vmem:[#allocation11 + $0x8] sm:$0xff] %v605
    %614 = vst [vmem:[#allocation11 + $0x10] sm:$0xff] %v606
    %615 = vst [vmem:[#allocation11 + $0x18] sm:$0xff] %v607
    // Predicated region
    $region34: #{tpu_custom_call.1} parent=1 // pred_check
      _
    $region35: #{tpu_custom_call.1} parent=1 // pred_check_branch
      %617 = sbr.rel (0) target = $region37
    $region36: #{tpu_custom_call.1} parent=1 // pred_region
      %619 = vsyncadd [#allocation4], 0
      %s620 = sshll.u32 [#allocation10], 4
      %s621 = int_to_ptr.vmem [resolvable:$true] %s620
      %s622 = sshll.u32 %s4, 4
      %s623 = int_to_ptr.hbm [resolvable:$true] %s622
      %628 = dma.vmem_to_hbm [thread:$0]  %s621, 512, %s623, [#allocation4], 256, 256, 16
    $region37: #{tpu_custom_call.1} parent=1 // pred_fallthru
      _
    // Predicated region
    $region38: #{tpu_custom_call.1} parent=1 // pred_check
      _
    $region39: #{tpu_custom_call.1} parent=1 // pred_check_branch
      %630 = sbr.rel (0) target = $region41
    $region40: #{tpu_custom_call.1} parent=1 // pred_region
      %632 = vsyncadd [#allocation12], 0
      %s633 = sshll.u32 [#allocation11], 4
      %s634 = int_to_ptr.vmem [resolvable:$true] %s633
      %s635 = sshll.u32 %s5, 4
      %s636 = int_to_ptr.hbm [resolvable:$true] %s635
      %641 = dma.vmem_to_hbm [thread:$0]  %s634, 512, %s636, [#allocation12], 256, 256, 16
    $region41: #{tpu_custom_call.1} parent=1 // pred_fallthru
      _
    // Predicated region
    $region42: #{tpu_custom_call.1} parent=1 // pred_check
      _
    $region43: #{tpu_custom_call.1} parent=1 // pred_check_branch
      %643 = sbr.rel (0) target = $region45
    $region44: #{tpu_custom_call.1} parent=1 // pred_region
      %645 = dma.done [#allocation4], 512
    $region45: #{tpu_custom_call.1} parent=1 // pred_fallthru
      _
    // Predicated region
    $region46: #{tpu_custom_call.1} parent=1 // pred_check
      _
    $region47: #{tpu_custom_call.1} parent=1 // pred_check_branch
      %647 = sbr.rel (0) target = $region49
    $region48: #{tpu_custom_call.1} parent=1 // pred_region
      %649 = dma.done [#allocation12], 512
    $region49: #{tpu_custom_call.1} parent=1 // pred_fallthru
      _
    %650 = vsyncpa [#allocation3], 1
    %651 = vsyncpa [#allocation6], 1
    %652 = vsyncpa [#allocation9], 1
    %653 = vsyncpa [#allocation4], 1
    %654 = vsyncpa [#allocation12], 1

</llo_original>
